<compile_context>
chip_gen: v7x
topology: tpu7x:2x2x1
jax: 0.10.0
libtpu: 0.0.40
codegen_flags: <defaults>
</compile_context>

<pallas_src>
import math
import functools

import jax
import jax.numpy as jnp
from jax import lax
from jax.experimental import pallas as pl
from jax.experimental.pallas import tpu as pltpu


def _nerv_conv_gelu_kernel(wt_ref, b_ref, m_ref, x_ref, o_ref, xp_ref, rhs_ref,
                           *, width):
    """Fused 3x3-conv (as one im2col matmul) + bias + exact GELU, one image/step.

    wt_ref : (Cout, K)            conv weights, K = 9*Cin, tap-major columns
    b_ref  : (Cout, 1)  f32       conv bias
    m_ref  : (2, HW)              0/1 masks: row0 = (w != 0), row1 = (w != W-1)
    x_ref  : (1, Cin, HW)         flattened input image (lane axis = H*W)
    o_ref  : (1, Cout, HW)        conv+GELU output, NC(HW) layout (lane-dense)
    xp_ref : (Cin, HW + 2W + 2)   VMEM staging buffer with zero guard bands
    rhs_ref: (K, HW)              VMEM im2col scratch (matmul RHS)
    """
    cin = x_ref.shape[1]
    k, hw = rhs_ref.shape

    # Stage the image into a zero-guarded flat buffer: [0]*(W+1) ++ x ++ [0]*(W+1).
    # Every conv tap then becomes a *static* lane slice of this buffer.
    xp_ref[...] = jnp.zeros_like(xp_ref)
    xp_ref[:, width + 1: width + 1 + hw] = x_ref[0]
    xp = xp_ref[...]                                   # (Cin, HW + 2W + 2)

    lv = m_ref[0:1, :]                                 # left-valid  (w != 0)
    rv = m_ref[1:2, :]                                 # right-valid (w != W-1)

    # In-VMEM im2col: tap (dy, dx) of output pixel p = h*W + w is the flat input
    # shifted by s = (dy-1)*W + (dx-1); the guard bands supply the top/bottom
    # zero padding, the masks supply the left/right zero padding.
    for dy in range(3):
        for dx in range(3):
            start = (width + 1) + (dy - 1) * width + (dx - 1)
            tap = xp[:, start: start + hw]             # (Cin, HW)
            if dx == 0:
                tap = tap * lv
            elif dx == 2:
                tap = tap * rv
            r0 = (dy * 3 + dx) * cin
            rhs_ref[r0: r0 + cin, :] = tap

    # Single MXU matmul: (Cout, K) x (K, HW) -> (Cout, HW), f32 accumulation.
    acc = lax.dot_general(
        wt_ref[...], rhs_ref[...],
        (((1,), (0,)), ((), ())),
        preferred_element_type=jnp.float32,
    )
    acc = acc + b_ref[...]                             # (Cout, 1) lane-broadcast

    # Exact (erf-based) GELU, matching torch.nn.GELU() default, f32 math.
    inv_sqrt2 = jnp.float32(0.7071067811865476)
    out = 0.5 * acc * (1.0 + lax.erf(acc * inv_sqrt2))

    o_ref[0] = out.astype(o_ref.dtype)


def nerv_block_forward(x_nchw, weight, bias, up_sample):
    """NervBlock forward.

    x_nchw : (N, Cin, H, W)        NCHW (PyTorch convention)
    weight : (Cout, Cin, 3, 3)     Conv2d weight (OIHW)
    bias   : (Cout,)               Conv2d bias
    returns: (N, Cout // r^2, H*r, W*r)  NCHW, r = up_sample
    """
    N, Cin, H, W = x_nchw.shape
    Cout = weight.shape[0]
    r = up_sample
    assert Cout % (r * r) == 0, "dim_out must be divisible by up_sample**2"
    HW = H * W
    K = 9 * Cin
    dt = x_nchw.dtype
    isz = jnp.dtype(dt).itemsize

    # ---- cheap glue (no data inflation) ------------------------------------
    x_flat = x_nchw.reshape(N, Cin, HW)                      # contiguous reshape

    # wT[co, (dy*3+dx)*Cin + ci] = weight[co, ci, dy, dx]; weights in input dtype.
    w_t = jnp.transpose(weight, (0, 2, 3, 1)).reshape(Cout, K).astype(dt)
    b2 = bias.reshape(Cout, 1).astype(jnp.float32)

    # Column-border masks (0/1), one lane-vector per side; 2*HW elements total.
    col = jnp.arange(HW, dtype=jnp.int32) % W
    masks = jnp.stack([(col != 0), (col != W - 1)]).astype(dt)   # (2, HW)

    cost = pl.CostEstimate(
        flops=2 * N * Cout * K * HW,
        transcendentals=N * Cout * HW,
        bytes_accessed=(N * Cin * HW * isz            # input read
                        + Cout * K * isz + Cout * 4   # weights + bias
                        + 2 * HW * isz                # masks
                        + N * Cout * HW * isz),       # output write
    )

    kern = functools.partial(_nerv_conv_gelu_kernel, width=W)
    conv_gelu = pl.pallas_call(
        kern,
        out_shape=jax.ShapeDtypeStruct((N, Cout, HW), dt),
        grid_spec=pltpu.PrefetchScalarGridSpec(
            num_scalar_prefetch=0,
            grid=(N,),
            in_specs=[
                pl.BlockSpec((Cout, K), lambda n: (0, 0)),          # weights
                pl.BlockSpec((Cout, 1), lambda n: (0, 0)),          # bias
                pl.BlockSpec((2, HW), lambda n: (0, 0)),            # border masks
                pl.BlockSpec((1, Cin, HW), lambda n: (n, 0, 0)),    # image
            ],
            out_specs=pl.BlockSpec((1, Cout, HW), lambda n: (n, 0, 0)),
            scratch_shapes=[
                pltpu.VMEM((Cin, HW + 2 * W + 2), dt),   # zero-guarded staging
                pltpu.VMEM((K, HW), dt),                 # im2col RHS
            ],
        ),
        compiler_params=pltpu.CompilerParams(
            dimension_semantics=("parallel",),
        ),
        cost_estimate=cost,
    )
    y = conv_gelu(w_t, b2, masks, x_flat)                    # (N, Cout, HW)

    # ---- PixelShuffle(r): index plumbing (GELU already applied; elementwise
    # commutes with the permutation). See TODO(synk) in the header.
    Cs = Cout // (r * r)
    y = y.reshape(N, Cs, r, r, H, W)
    y = jnp.transpose(y, (0, 1, 4, 2, 5, 3)).reshape(N, Cs, H * r, W * r)
    return y


def _reference_forward(x_nchw, weight, bias, up_sample):
    """Pure-JAX reference (lax.conv + pixel shuffle + exact GELU)."""
    y = lax.conv_general_dilated(
        x_nchw, weight,
        window_strides=(1, 1), padding=((1, 1), (1, 1)),
        dimension_numbers=("NCHW", "OIHW", "NCHW"),
    ) + bias[None, :, None, None]
    N, C, H, W = y.shape
    r = up_sample
    Cs = C // (r * r)
    y = y.reshape(N, Cs, r, r, H, W)
    y = jnp.transpose(y, (0, 1, 4, 2, 5, 3)).reshape(N, Cs, H * r, W * r)
    return 0.5 * y * (1.0 + lax.erf(y / jnp.sqrt(2.0)))


if __name__ == "__main__":
    # Small config consistent with the module: dim_in=4, dim_out=16, up_sample=2.
    N, dim_in, H, W = 2, 4, 16, 16
    dim_out, up_sample = 16, 2

    key = jax.random.PRNGKey(0)
    kx, kw, kb = jax.random.split(key, 3)

    x = jax.random.normal(kx, (N, dim_in, H, W), dtype=jnp.float32)
    # Deterministic parameter init (Conv2d-like uniform bound).
    fan_in = dim_in * 3 * 3
    bound = 1.0 / math.sqrt(fan_in)
    weight = jax.random.uniform(kw, (dim_out, dim_in, 3, 3),
                                minval=-bound, maxval=bound, dtype=jnp.float32)
    bias = jax.random.uniform(kb, (dim_out,),
                              minval=-bound, maxval=bound, dtype=jnp.float32)

    fwd = jax.jit(functools.partial(nerv_block_forward, up_sample=up_sample))
    out = fwd(x, weight, bias)
    jax.block_until_ready(out)

    ref = _reference_forward(x, weight, bias, up_sample)
    assert out.shape == (N, dim_out // (up_sample ** 2), H * up_sample, W * up_sample)
    assert jnp.allclose(out, ref, atol=1e-4, rtol=1e-4), "mismatch vs reference"

    print("KERNEL_OK")
</pallas_src>

<mosaic_0001>
module attributes {stable_mosaic.version = 11 : i64} {
  func.func @_nerv_conv_gelu_kernel(%arg0: i32, %arg1: memref<16x36xf32, #tpu.memory_space<vmem>>, %arg2: memref<16x1xf32, #tpu.memory_space<vmem>>, %arg3: memref<2x256xf32, #tpu.memory_space<vmem>>, %arg4: memref<1x4x256xf32, #tpu.memory_space<vmem>>, %arg5: memref<1x16x256xf32, #tpu.memory_space<vmem>>, %arg6: memref<4x290xf32, #tpu.memory_space<vmem>>, %arg7: memref<36x256xf32, #tpu.memory_space<vmem>>) attributes {dimension_semantics = [#tpu.dimension_semantics<parallel>], iteration_bounds = array<i64: 2>, scalar_prefetch = 0 : i64, scratch_operands = 2 : i64, tpu.core_type = #tpu.core_type<tc>, window_params = [{pipeline_mode = #tpu.pipeline_mode<synchronous>, transform_indices = @transform_0, window_bounds = array<i64: 16, 36>}, {pipeline_mode = #tpu.pipeline_mode<synchronous>, transform_indices = @transform_1, window_bounds = array<i64: 16, 1>}, {pipeline_mode = #tpu.pipeline_mode<synchronous>, transform_indices = @transform_2, window_bounds = array<i64: 2, 256>}, {transform_indices = @transform_3, window_bounds = array<i64: 1, 4, 256>}, {transform_indices = @transform_4, window_bounds = array<i64: 1, 16, 256>}]} {
    %cst = arith.constant 0.000000e+00 : f32
    %0 = vector.broadcast %cst : f32 to vector<4x290xf32>
    %c0 = arith.constant 0 : index
    %c0_0 = arith.constant 0 : index
    %1 = vector.load %arg6[%c0, %c0_0] : memref<4x290xf32, #tpu.memory_space<vmem>>, vector<4x290xf32>
    tpu.vector_store %arg6[%c0, %c0_0], %0 {strides = array<i32>} : memref<4x290xf32, #tpu.memory_space<vmem>>, vector<4x290xf32>,
    %c0_1 = arith.constant 0 : index
    %c0_2 = arith.constant 0 : index
    %c0_3 = arith.constant 0 : index
    %2 = vector.load %arg4[%c0_1, %c0_2, %c0_3] : memref<1x4x256xf32, #tpu.memory_space<vmem>>, vector<1x4x256xf32>
    %3 = vector.shape_cast %2 : vector<1x4x256xf32> to vector<4x256xf32>
    %c0_4 = arith.constant 0 : index
    %c17 = arith.constant 17 : index
    %4 = vector.load %arg6[%c0_4, %c17] : memref<4x290xf32, #tpu.memory_space<vmem>>, vector<4x256xf32>
    tpu.vector_store %arg6[%c0_4, %c17], %3 {strides = array<i32>} : memref<4x290xf32, #tpu.memory_space<vmem>>, vector<4x256xf32>,
    %c0_5 = arith.constant 0 : index
    %c0_6 = arith.constant 0 : index
    %5 = vector.load %arg6[%c0_5, %c0_6] : memref<4x290xf32, #tpu.memory_space<vmem>>, vector<4x290xf32>
    %c0_7 = arith.constant 0 : index
    %c0_8 = arith.constant 0 : index
    %6 = vector.load %arg3[%c0_7, %c0_8] : memref<2x256xf32, #tpu.memory_space<vmem>>, vector<1x256xf32>
    %c1 = arith.constant 1 : index
    %c0_9 = arith.constant 0 : index
    %7 = vector.load %arg3[%c1, %c0_9] : memref<2x256xf32, #tpu.memory_space<vmem>>, vector<1x256xf32>
    %8 = vector.extract_strided_slice %5 {offsets = [0, 0], sizes = [4, 256], strides = [1, 1]} : vector<4x290xf32> to vector<4x256xf32>
    %9 = vector.broadcast %6 : vector<1x256xf32> to vector<4x256xf32>
    %10 = arith.mulf %8, %9 : vector<4x256xf32>
    %c0_10 = arith.constant 0 : index
    %c0_11 = arith.constant 0 : index
    %11 = vector.load %arg7[%c0_10, %c0_11] : memref<36x256xf32, #tpu.memory_space<vmem>>, vector<4x256xf32>
    tpu.vector_store %arg7[%c0_10, %c0_11], %10 {strides = array<i32>} : memref<36x256xf32, #tpu.memory_space<vmem>>, vector<4x256xf32>,
    %12 = vector.extract_strided_slice %5 {offsets = [0, 1], sizes = [4, 256], strides = [1, 1]} : vector<4x290xf32> to vector<4x256xf32>
    %c4 = arith.constant 4 : index
    %c0_12 = arith.constant 0 : index
    %13 = vector.load %arg7[%c4, %c0_12] : memref<36x256xf32, #tpu.memory_space<vmem>>, vector<4x256xf32>
    tpu.vector_store %arg7[%c4, %c0_12], %12 {strides = array<i32>} : memref<36x256xf32, #tpu.memory_space<vmem>>, vector<4x256xf32>,
    %14 = vector.extract_strided_slice %5 {offsets = [0, 2], sizes = [4, 256], strides = [1, 1]} : vector<4x290xf32> to vector<4x256xf32>
    %15 = vector.broadcast %7 : vector<1x256xf32> to vector<4x256xf32>
    %16 = arith.mulf %14, %15 : vector<4x256xf32>
    %c8 = arith.constant 8 : index
    %c0_13 = arith.constant 0 : index
    %17 = vector.load %arg7[%c8, %c0_13] : memref<36x256xf32, #tpu.memory_space<vmem>>, vector<4x256xf32>
    tpu.vector_store %arg7[%c8, %c0_13], %16 {strides = array<i32>} : memref<36x256xf32, #tpu.memory_space<vmem>>, vector<4x256xf32>,
    %18 = vector.extract_strided_slice %5 {offsets = [0, 16], sizes = [4, 256], strides = [1, 1]} : vector<4x290xf32> to vector<4x256xf32>
    %19 = vector.broadcast %6 : vector<1x256xf32> to vector<4x256xf32>
    %20 = arith.mulf %18, %19 : vector<4x256xf32>
    %c12 = arith.constant 12 : index
    %c0_14 = arith.constant 0 : index
    %21 = vector.load %arg7[%c12, %c0_14] : memref<36x256xf32, #tpu.memory_space<vmem>>, vector<4x256xf32>
    tpu.vector_store %arg7[%c12, %c0_14], %20 {strides = array<i32>} : memref<36x256xf32, #tpu.memory_space<vmem>>, vector<4x256xf32>,
    %22 = vector.extract_strided_slice %5 {offsets = [0, 17], sizes = [4, 256], strides = [1, 1]} : vector<4x290xf32> to vector<4x256xf32>
    %c16 = arith.constant 16 : index
    %c0_15 = arith.constant 0 : index
    %23 = vector.load %arg7[%c16, %c0_15] : memref<36x256xf32, #tpu.memory_space<vmem>>, vector<4x256xf32>
    tpu.vector_store %arg7[%c16, %c0_15], %22 {strides = array<i32>} : memref<36x256xf32, #tpu.memory_space<vmem>>, vector<4x256xf32>,
    %24 = vector.extract_strided_slice %5 {offsets = [0, 18], sizes = [4, 256], strides = [1, 1]} : vector<4x290xf32> to vector<4x256xf32>
    %25 = vector.broadcast %7 : vector<1x256xf32> to vector<4x256xf32>
    %26 = arith.mulf %24, %25 : vector<4x256xf32>
    %c20 = arith.constant 20 : index
    %c0_16 = arith.constant 0 : index
    %27 = vector.load %arg7[%c20, %c0_16] : memref<36x256xf32, #tpu.memory_space<vmem>>, vector<4x256xf32>
    tpu.vector_store %arg7[%c20, %c0_16], %26 {strides = array<i32>} : memref<36x256xf32, #tpu.memory_space<vmem>>, vector<4x256xf32>,
    %28 = vector.extract_strided_slice %5 {offsets = [0, 32], sizes = [4, 256], strides = [1, 1]} : vector<4x290xf32> to vector<4x256xf32>
    %29 = vector.broadcast %6 : vector<1x256xf32> to vector<4x256xf32>
    %30 = arith.mulf %28, %29 : vector<4x256xf32>
    %c24 = arith.constant 24 : index
    %c0_17 = arith.constant 0 : index
    %31 = vector.load %arg7[%c24, %c0_17] : memref<36x256xf32, #tpu.memory_space<vmem>>, vector<4x256xf32>
    tpu.vector_store %arg7[%c24, %c0_17], %30 {strides = array<i32>} : memref<36x256xf32, #tpu.memory_space<vmem>>, vector<4x256xf32>,
    %32 = vector.extract_strided_slice %5 {offsets = [0, 33], sizes = [4, 256], strides = [1, 1]} : vector<4x290xf32> to vector<4x256xf32>
    %c28 = arith.constant 28 : index
    %c0_18 = arith.constant 0 : index
    %33 = vector.load %arg7[%c28, %c0_18] : memref<36x256xf32, #tpu.memory_space<vmem>>, vector<4x256xf32>
    tpu.vector_store %arg7[%c28, %c0_18], %32 {strides = array<i32>} : memref<36x256xf32, #tpu.memory_space<vmem>>, vector<4x256xf32>,
    %34 = vector.extract_strided_slice %5 {offsets = [0, 34], sizes = [4, 256], strides = [1, 1]} : vector<4x290xf32> to vector<4x256xf32>
    %35 = vector.broadcast %7 : vector<1x256xf32> to vector<4x256xf32>
    %36 = arith.mulf %34, %35 : vector<4x256xf32>
    %c32 = arith.constant 32 : index
    %c0_19 = arith.constant 0 : index
    %37 = vector.load %arg7[%c32, %c0_19] : memref<36x256xf32, #tpu.memory_space<vmem>>, vector<4x256xf32>
    tpu.vector_store %arg7[%c32, %c0_19], %36 {strides = array<i32>} : memref<36x256xf32, #tpu.memory_space<vmem>>, vector<4x256xf32>,
    %c0_20 = arith.constant 0 : index
    %c0_21 = arith.constant 0 : index
    %38 = vector.load %arg1[%c0_20, %c0_21] : memref<16x36xf32, #tpu.memory_space<vmem>>, vector<16x36xf32>
    %c0_22 = arith.constant 0 : index
    %c0_23 = arith.constant 0 : index
    %39 = vector.load %arg7[%c0_22, %c0_23] : memref<36x256xf32, #tpu.memory_space<vmem>>, vector<36x256xf32>
    %cst_24 = arith.constant dense<0.000000e+00> : vector<16x256xf32>
    %40 = tpu.matmul %38, %39, %cst_24 {dimension_numbers = #tpu.dot_dimension_numbers<[1], [0], [0], [1], [0, 0, 1, 1], [], []>} : vector<16x36xf32>, vector<36x256xf32>, vector<16x256xf32> -> vector<16x256xf32>
    %c0_25 = arith.constant 0 : index
    %c0_26 = arith.constant 0 : index
    %41 = vector.load %arg2[%c0_25, %c0_26] : memref<16x1xf32, #tpu.memory_space<vmem>>, vector<16x1xf32>
    %42 = vector.broadcast %41 : vector<16x1xf32> to vector<16x256xf32>
    %43 = arith.addf %40, %42 : vector<16x256xf32>
    %cst_27 = arith.constant 5.000000e-01 : f32
    %44 = vector.broadcast %cst_27 : f32 to vector<16x256xf32>
    %45 = arith.mulf %44, %43 : vector<16x256xf32>
    %cst_28 = arith.constant 0.707106769 : f32
    %46 = vector.broadcast %cst_28 : f32 to vector<16x256xf32>
    %47 = arith.mulf %43, %46 : vector<16x256xf32>
    %48 = math.erf %47 : vector<16x256xf32>
    %cst_29 = arith.constant 1.000000e+00 : f32
    %49 = vector.broadcast %cst_29 : f32 to vector<16x256xf32>
    %50 = arith.addf %49, %48 : vector<16x256xf32>
    %51 = arith.mulf %45, %50 : vector<16x256xf32>
    %c0_30 = arith.constant 0 : index
    %c0_31 = arith.constant 0 : index
    %c0_32 = arith.constant 0 : index
    %52 = vector.load %arg5[%c0_30, %c0_31, %c0_32] : memref<1x16x256xf32, #tpu.memory_space<vmem>>, vector<1x16x256xf32>
    %53 = vector.shape_cast %52 : vector<1x16x256xf32> to vector<16x256xf32>
    %54 = vector.shape_cast %51 : vector<16x256xf32> to vector<1x16x256xf32>
    tpu.vector_store %arg5[%c0_30, %c0_31, %c0_32], %54 {strides = array<i32>} : memref<1x16x256xf32, #tpu.memory_space<vmem>>, vector<1x16x256xf32>,
    return
  }
  func.func @transform_0(%arg0: i32) -> (i32, i32) {
    %c0_i32 = arith.constant 0 : i32
    %c0_i32_0 = arith.constant 0 : i32
    %c0_i32_1 = arith.constant 0 : i32
    return %c0_i32, %c0_i32_0 : i32, i32
  }
  func.func @transform_1(%arg0: i32) -> (i32, i32) {
    %c0_i32 = arith.constant 0 : i32
    %c0_i32_0 = arith.constant 0 : i32
    %c0_i32_1 = arith.constant 0 : i32
    return %c0_i32, %c0_i32_0 : i32, i32
  }
  func.func @transform_2(%arg0: i32) -> (i32, i32) {
    %c0_i32 = arith.constant 0 : i32
    %c0_i32_0 = arith.constant 0 : i32
    %c0_i32_1 = arith.constant 0 : i32
    return %c0_i32, %c0_i32_0 : i32, i32
  }
  func.func @transform_3(%arg0: i32) -> (i32, i32, i32) {
    %c0_i32 = arith.constant 0 : i32
    %c0_i32_0 = arith.constant 0 : i32
    %c0_i32_1 = arith.constant 0 : i32
    return %arg0, %c0_i32, %c0_i32_0 : i32, i32, i32
  }
  func.func @transform_4(%arg0: i32) -> (i32, i32, i32) {
    %c0_i32 = arith.constant 0 : i32
    %c0_i32_0 = arith.constant 0 : i32
    %c0_i32_1 = arith.constant 0 : i32
    return %arg0, %c0_i32, %c0_i32_0 : i32, i32, i32
  }
}

</mosaic_0001>

<llo_original>
// kernel: nerv_block_forward.1
$region0: #{nerv_block_forward.1}
  #allocation0 [shape = 'u32[]', space=smem, size = 0x4, offset = 0x4, fixed_abs, tag = 'smem constant byte address 0x4 - core index']
  #allocation1 [shape = 'u32[144,128]{1,0:T(1,128)}', space=vmem, size = 0x12000, scoped, tag = 'internal scratch']
  #allocation2 [shape = 'f32[4,290]{1,0:T(4,128)}', space=vmem, size = 0x1800, scoped, tag = 'scratch operand']
  #allocation3 [shape = 'f32[36,256]{1,0:T(8,128)}', space=vmem, size = 0xa000, scoped, tag = 'scratch operand']
  %s0 = inlined_call_operand.vmem [shape: f32[16,36], index: 0, kind: input, shape index: {}]
  %s1 = inlined_call_operand.vmem [shape: f32[16,1], index: 1, kind: input, shape index: {}]
  %s2 = inlined_call_operand.vmem [shape: f32[2,256], index: 2, kind: input, shape index: {}]
  %s3 = inlined_call_operand.vmem [shape: f32[2,4,256], index: 3, kind: input, shape index: {}]
  %s4 = inlined_call_operand.vmem [shape: f32[2,16,256], index: 4, kind: output, shape index: {}]
  %s5 = sld [smem:[#allocation0]]
  $region49: #{nerv_block_forward.1} parent=0
    _
  %s7 = ssub.s32 1, %s5
  %s8 = scalar_select 0, %s7, %s5
  loop: start=0, step=1, limit=4
  $region2: #{nerv_block_forward.1} parent=0 // loop_pre_header
    _
  $region3: #{nerv_block_forward.1} parent=0 // loop_header
    %s10 = sphi 0, %s14
    %p11 = scmp.ge.s32.totalorder %s10, 4
    %s18 = sphi 0, %s18
    %s20 = sphi 0, %s18
    %s21 = sphi 0, %s20
    %s35 = sphi 0, %s21
    %s39 = sphi 0, %s39
    %s41 = sphi 0, %s39
    %s42 = sphi 0, %s41
    %s56 = sphi 0, %s42
    %s60 = sphi 0, %s60
    %s62 = sphi 0, %s60
    %s63 = sphi 0, %s62
    %s77 = sphi 0, %s63
    %s83 = sphi 0, %s85
    %s86 = sphi 0, %s83
    %s87 = sphi 0, %s86
    %s103 = sphi 0, %s87
    %s109 = sphi 0, %s111
    %s112 = sphi 0, %s109
    %s113 = sphi 0, %s112
    %s129 = sphi 0, %s113
  $region4: #{nerv_block_forward.1} parent=0 // loop_header_branch
    %13 = sbr.rel (%p11) target = $region8
  $region5: #{nerv_block_forward.1} parent=0 // loop_body
    %s15 = ssub.s32 %s10, 1
    %s16 = ssub.s32 %s10, 2
    %s17 = sadd.s32 %s10, 1
    %s19 = sadd.s32 %s18, 1
    %p22 = scmp.eq.s32.totalorder %s10, 1
    %p23 = scmp.ne.s32.totalorder %s18, %s20
    %p24 = scmp.eq.s32.totalorder %s10, 0
    %p25 = por %p23, %p24
    %p26 = scmp.ne.s32.totalorder %s18, %s20
    %p27 = scmp.eq.s32.totalorder %s15, 1
    %p28 = por %p26, %p27
    %p29 = scmp.ne.s32.totalorder %s20, %s21
    %p30 = scmp.eq.s32.totalorder %s15, 0
    %p31 = por %p29, %p30
    %p32 = scmp.ne.s32.totalorder %s20, %s21
    %p33 = scmp.eq.s32.totalorder %s16, 1
    %p34 = por %p32, %p33
    %p36 = scmp.ne.s32.totalorder %s21, %s35
    %p37 = scmp.eq.s32.totalorder %s16, 0
    %p38 = por %p36, %p37
    %s40 = sadd.s32 %s39, 1
    %p43 = scmp.eq.s32.totalorder %s10, 1
    %p44 = scmp.ne.s32.totalorder %s39, %s41
    %p45 = scmp.eq.s32.totalorder %s10, 0
    %p46 = por %p44, %p45
    %p47 = scmp.ne.s32.totalorder %s39, %s41
    %p48 = scmp.eq.s32.totalorder %s15, 1
    %p49 = por %p47, %p48
    %p50 = scmp.ne.s32.totalorder %s41, %s42
    %p51 = scmp.eq.s32.totalorder %s15, 0
    %p52 = por %p50, %p51
    %p53 = scmp.ne.s32.totalorder %s41, %s42
    %p54 = scmp.eq.s32.totalorder %s16, 1
    %p55 = por %p53, %p54
    %p57 = scmp.ne.s32.totalorder %s42, %s56
    %p58 = scmp.eq.s32.totalorder %s16, 0
    %p59 = por %p57, %p58
    %s61 = sadd.s32 %s60, 1
    %p64 = scmp.eq.s32.totalorder %s10, 1
    %p65 = scmp.ne.s32.totalorder %s60, %s62
    %p66 = scmp.eq.s32.totalorder %s10, 0
    %p67 = por %p65, %p66
    %p68 = scmp.ne.s32.totalorder %s60, %s62
    %p69 = scmp.eq.s32.totalorder %s15, 1
    %p70 = por %p68, %p69
    %p71 = scmp.ne.s32.totalorder %s62, %s63
    %p72 = scmp.eq.s32.totalorder %s15, 0
    %p73 = por %p71, %p72
    %p74 = scmp.ne.s32.totalorder %s62, %s63
    %p75 = scmp.eq.s32.totalorder %s16, 1
    %p76 = por %p74, %p75
    %p78 = scmp.ne.s32.totalorder %s63, %s77
    %p79 = scmp.eq.s32.totalorder %s16, 0
    %p80 = por %p78, %p79
    %s81 = ssub.s32 %s10, %s17
    %p82 = scmp.eq.s32.totalorder %s81, 0
    %s84 = sadd.s32 %s83, 1
    %s85 = scalar_select %p82, %s83, %s84
    %p88 = pneg %p82
    %p89 = scmp.eq.s32.totalorder %s10, 1
    %p90 = por %p88, %p89
    %p91 = scmp.ne.s32.totalorder %s83, %s86
    %p92 = scmp.eq.s32.totalorder %s10, 0
    %p93 = por %p91, %p92
    %p94 = scmp.ne.s32.totalorder %s83, %s86
    %p95 = scmp.eq.s32.totalorder %s15, 1
    %p96 = por %p94, %p95
    %p97 = scmp.ne.s32.totalorder %s86, %s87
    %p98 = scmp.eq.s32.totalorder %s15, 0
    %p99 = por %p97, %p98
    %p100 = scmp.ne.s32.totalorder %s86, %s87
    %p101 = scmp.eq.s32.totalorder %s16, 1
    %p102 = por %p100, %p101
    %p104 = scmp.ne.s32.totalorder %s87, %s103
    %p105 = scmp.eq.s32.totalorder %s16, 0
    %p106 = por %p104, %p105
    %s107 = ssub.s32 %s10, %s17
    %p108 = scmp.eq.s32.totalorder %s107, 0
    %s110 = sadd.s32 %s109, 1
    %s111 = scalar_select %p108, %s109, %s110
    %p114 = pneg %p108
    %p115 = scmp.eq.s32.totalorder %s10, 1
    %p116 = por %p114, %p115
    %p117 = scmp.ne.s32.totalorder %s109, %s112
    %p118 = scmp.eq.s32.totalorder %s10, 0
    %p119 = por %p117, %p118
    %p120 = scmp.ne.s32.totalorder %s109, %s112
    %p121 = scmp.eq.s32.totalorder %s15, 1
    %p122 = por %p120, %p121
    %p123 = scmp.ne.s32.totalorder %s112, %s113
    %p124 = scmp.eq.s32.totalorder %s15, 0
    %p125 = por %p123, %p124
    %p126 = scmp.ne.s32.totalorder %s112, %s113
    %p127 = scmp.eq.s32.totalorder %s16, 1
    %p128 = por %p126, %p127
    %p130 = scmp.ne.s32.totalorder %s113, %s129
    %p131 = scmp.eq.s32.totalorder %s16, 0
    %p132 = por %p130, %p131
    %p133 = scmp.le.s32.totalorder 1, %s10
    %p134 = scmp.lt.s32.totalorder %s10, 3
    %p135 = pnand %p133, %p134
    %p136 = pneg %p135
    // Predicated region
    $region9: #{nerv_block_forward.1} parent=5 // pred_check
      _
    $region10: #{nerv_block_forward.1} parent=5 // pred_check_branch
      %138 = sbr.rel (%p135) target = $region12
    $region11: #{nerv_block_forward.1} parent=5 // pred_region
      %s139 = ssub.s32 %s10, 1
      // Predicated region
      $region13: #{nerv_block_forward.1} parent=11 // pred_check
        %p140 = pneg %p31
      $region14: #{nerv_block_forward.1} parent=11 // pred_check_branch
        %142 = sbr.rel (%p140) target = $region16
      $region15: #{nerv_block_forward.1} parent=11 // pred_region
        _
      $region16: #{nerv_block_forward.1} parent=11 // pred_fallthru
        _
      // Predicated region
      $region17: #{nerv_block_forward.1} parent=11 // pred_check
        %p143 = pneg %p52
      $region18: #{nerv_block_forward.1} parent=11 // pred_check_branch
        %145 = sbr.rel (%p143) target = $region20
      $region19: #{nerv_block_forward.1} parent=11 // pred_region
        _
      $region20: #{nerv_block_forward.1} parent=11 // pred_fallthru
        _
      // Predicated region
      $region21: #{nerv_block_forward.1} parent=11 // pred_check
        %p146 = pneg %p73
      $region22: #{nerv_block_forward.1} parent=11 // pred_check_branch
        %148 = sbr.rel (%p146) target = $region24
      $region23: #{nerv_block_forward.1} parent=11 // pred_region
        _
      $region24: #{nerv_block_forward.1} parent=11 // pred_fallthru
        _
    $region12: #{nerv_block_forward.1} parent=5 // pred_fallthru
      _
    %p149 = scmp.lt.s32.totalorder %s10, 2
    // Predicated region
    $region25: #{nerv_block_forward.1} parent=5 // pred_check
      %p150 = pneg %p149
    $region26: #{nerv_block_forward.1} parent=5 // pred_check_branch
      %152 = sbr.rel (%p150) target = $region28
    $region27: #{nerv_block_forward.1} parent=5 // pred_region
      // Predicated region
      $region29: #{nerv_block_forward.1} parent=27 // pred_check
        %p153 = pneg %p93
      $region30: #{nerv_block_forward.1} parent=27 // pred_check_branch
        %155 = sbr.rel (%p153) target = $region32
      $region31: #{nerv_block_forward.1} parent=27 // pred_region
        %p156 = scmp.lt.s32.totalorder %s10, 1
        %s157 = scalar_select %p156, %s10, 1
        %s158 = smul.addr %s157, 2
        %s159 = smul.addr %s158, 4
        %s160 = scalar_lea.vmem %s3, %s159
      $region32: #{nerv_block_forward.1} parent=27 // pred_fallthru
        _
    $region28: #{nerv_block_forward.1} parent=5 // pred_fallthru
      _
    %p161 = scmp.le.s32.totalorder 1, %s10
    %p162 = scmp.lt.s32.totalorder %s10, 3
    %p163 = pnand %p161, %p162
    %p164 = pneg %p163
    // Predicated region
    $region33: #{nerv_block_forward.1} parent=5 // pred_check
      _
    $region34: #{nerv_block_forward.1} parent=5 // pred_check_branch
      %166 = sbr.rel (%p163) target = $region36
    $region35: #{nerv_block_forward.1} parent=5 // pred_region
      %s167 = ssub.s32 %s10, 1
      %p168 = pneg %p31
      %p169 = pneg %p28
      %p170 = pneg %p52
      %p171 = pneg %p49
      %p172 = pneg %p73
      %p173 = pneg %p70
      %p174 = scmp.lt.s32.totalorder %s15, 1
      %s175 = scalar_select %p174, %s15, 1
      %s176 = smul.addr %s175, 2
      %s177 = smul.addr %s176, 4
      %s178 = scalar_lea.vmem %s3, %s177
      %p179 = pneg %p99
      %p180 = pneg %p96
      %p181 = pneg %p125
      %p182 = pneg %p122
      %p183 = scmp.lt.s32.totalorder %s15, 1
      %s184 = scalar_select %p183, %s15, 1
      %s185 = smul.addr %s184, 4
      %s186 = smul.addr %s185, 8
      %s187 = scalar_lea.vmem %s4, %s186
      %p188 = scmp.lt.s32.totalorder %s15, 1
      %s189 = scalar_select %p188, %s15, 1
      %s190 = smul.addr %s189, 2
      %s191 = smul.addr %s190, 4
      %s192 = scalar_lea.vmem %s3, %s191
      %p193 = scmp.lt.s32.totalorder %s15, 1
      %s194 = scalar_select %p193, %s15, 1
      %s195 = smul.addr %s194, 4
      %s196 = smul.addr %s195, 8
      %s197 = scalar_lea.vmem %s4, %s196
      %198 = vst [vmem:[#allocation2] sm:$0xff] 0.0
      %vm199 = vcmask 273408
      %200 = vst.msk [vmem:[#allocation2 + $0x8] sm:$0xf] %vm199, 0.0
      %v201 = vld [vmem:[%s192] sm:$0xff]
      %203 = vrot.lane.b32.xlu0 %v201, 17
      %v204 = vpop.permute.xlu0 %203
      %v205 = vrot.slane %v204, 4
      %vm206 = vcmask 138240
      %v207 = vsel %vm206, %v205, %v204
      %vm210 = vcmask 1043592
      %vm211 = vcmask 1047556
      %vm212 = vmor %vm211, %vm210
      %213 = vst.msk [vmem:[#allocation2] sm:$0xff] %vm212, %v207
      %vm214 = vcmask 134144
      %215 = vst.msk [vmem:[#allocation2 + $0x8] sm:$0xf] %vm214, %v205
      %v216 = vld [vmem:[#allocation2] sm:$0xff]
      %v217 = vld [vmem:[#allocation2 + $0x8] sm:$0xf]
      %v218 = vld [vmem:[%s2] ss:$2 sm:$0x3]
      %s219 = scalar_lea.vmem %s2, 1
      %v220 = vld [vmem:[%s219] ss:$2 sm:$0x3]
      %v222 = vlaneseq
      %v223 = vshrl.u32 %v222, 7
      %v224 = vsub.s32 0, %v223
      %v225 = vrot.slane %v218, %v224
      %v226 = vlaneseq
      %v227 = vshrl.u32 %v226, 7
      %v228 = vsub.s32 1, %v227
      %v229 = vrot.slane %v218, %v228
      %v230 = vcombine.low %v225, %v229
      %v232 = vmul.f32 %v216, %v230
      %v234 = vcombine.high %v232, %v232
      %236 = vst [vmem:[#allocation3] sm:$0xf] %v232
      %237 = vst [vmem:[#allocation3 + $0x8] sm:$0xf] %v234
      %v240 = vcombine.low %v216, %v216
      %v241 = vcombine.low %v217, %v217
      %242 = vrot.lane.b32.xlu0 %v240, 127
      %v243 = vpop.permute.xlu0 %242
      %244 = vrot.lane.b32.xlu0 %v216, 127
      %v245 = vpop.permute.xlu0 %244
      %246 = vrot.lane.b32.xlu0 %v241, 127
      %v247 = vpop.permute.xlu0 %246
      %vm248 = vcmask 1039360
      %v249 = vsel %vm248, %v243, %v245
      %v250 = vsel %vm248, %v245, %v247
      %253 = vst [vmem:[#allocation3] sm:$0xf0] %v249
      %254 = vst [vmem:[#allocation3 + $0x8] sm:$0xf0] %v250
      %v256 = vlaneseq
      %v257 = vshrl.u32 %v256, 7
      %v258 = vsub.s32 0, %v257
      %v259 = vrot.slane %v220, %v258
      %v260 = vlaneseq
      %v261 = vshrl.u32 %v260, 7
      %v262 = vsub.s32 1, %v261
      %v263 = vrot.slane %v220, %v262
      %v264 = vcombine.low %v259, %v263
      %265 = vrot.lane.b32.xlu0 %v264, 2
      %v266 = vpop.permute.xlu0 %265
      %v267 = vrot.slane %v266, 4
      %vm268 = vcmask 15360
      %v269 = vsel %vm268, %v267, %v266
      %v272 = vmul.f32 %v216, %v269
      %v273 = vmul.f32 %v217, %v267
      %v276 = vcombine.high %v272, %v272
      %277 = vrot.lane.b32.xlu0 %v272, 126
      %v278 = vpop.permute.xlu0 %277
      %279 = vrot.lane.b32.xlu0 %v276, 126
      %v280 = vpop.permute.xlu0 %279
      %281 = vrot.lane.b32.xlu0 %v273, 126
      %v282 = vpop.permute.xlu0 %281
      %vm283 = vcmask 1031168
      %v284 = vsel %vm283, %v278, %v280
      %v285 = vsel %vm283, %v280, %v282
      %288 = vst [vmem:[#allocation3 + $0x10] sm:$0xf] %v284
      %289 = vst [vmem:[#allocation3 + $0x18] sm:$0xf] %v285
      %290 = vrot.lane.b32.xlu0 %v230, 16
      %v291 = vpop.permute.xlu0 %290
      %v292 = vrot.slane %v291, 4
      %vm293 = vcmask 130048
      %v294 = vsel %vm293, %v292, %v291
      %v297 = vmul.f32 %v216, %v294
      %v298 = vmul.f32 %v217, %v292
      %v301 = vcombine.low %v297, %v297
      %v302 = vcombine.low %v298, %v298
      %303 = vrot.lane.b32.xlu0 %v301, 112
      %v304 = vpop.permute.xlu0 %303
      %305 = vrot.lane.b32.xlu0 %v297, 112
      %v306 = vpop.permute.xlu0 %305
      %307 = vrot.lane.b32.xlu0 %v302, 112
      %v308 = vpop.permute.xlu0 %307
      %vm309 = vcmask 916480
      %v310 = vsel %vm309, %v304, %v306
      %v311 = vsel %vm309, %v306, %v308
      %314 = vst [vmem:[#allocation3 + $0x10] sm:$0xf0] %v310
      %315 = vst [vmem:[#allocation3 + $0x18] sm:$0xf0] %v311
      %v316 = vcombine.high %v216, %v216
      %317 = vrot.lane.b32.xlu0 %v216, 111
      %v318 = vpop.permute.xlu0 %317
      %319 = vrot.lane.b32.xlu0 %v316, 111
      %v320 = vpop.permute.xlu0 %319
      %321 = vrot.lane.b32.xlu0 %v217, 111
      %v322 = vpop.permute.xlu0 %321
      %vm323 = vcmask 908288
      %v324 = vsel %vm323, %v318, %v320
      %v325 = vsel %vm323, %v320, %v322
      %328 = vst [vmem:[#allocation3 + $0x20] sm:$0xf] %v324
      %329 = vst [vmem:[#allocation3 + $0x28] sm:$0xf] %v325
      %330 = vrot.lane.b32.xlu0 %v264, 18
      %v331 = vpop.permute.xlu0 %330
      %v332 = vrot.slane %v331, 4
      %vm333 = vcmask 146432
      %v334 = vsel %vm333, %v332, %v331
      %v337 = vmul.f32 %v216, %v334
      %v338 = vmul.f32 %v217, %v332
      %v341 = vcombine.low %v337, %v337
      %v342 = vcombine.low %v338, %v338
      %343 = vrot.lane.b32.xlu0 %v341, 110
      %v344 = vpop.permute.xlu0 %343
      %345 = vrot.lane.b32.xlu0 %v337, 110
      %v346 = vpop.permute.xlu0 %345
      %347 = vrot.lane.b32.xlu0 %v342, 110
      %v348 = vpop.permute.xlu0 %347
      %vm349 = vcmask 900096
      %v350 = vsel %vm349, %v344, %v346
      %v351 = vsel %vm349, %v346, %v348
      %354 = vst [vmem:[#allocation3 + $0x20] sm:$0xf0] %v350
      %355 = vst [vmem:[#allocation3 + $0x28] sm:$0xf0] %v351
      %356 = vrot.lane.b32.xlu0 %v230, 32
      %v357 = vpop.permute.xlu0 %356
      %v358 = vrot.slane %v357, 4
      %vm359 = vcmask 261120
      %v360 = vsel %vm359, %v358, %v357
      %v363 = vmul.f32 %v216, %v360
      %v364 = vmul.f32 %v217, %v358
      %v367 = vcombine.high %v363, %v363
      %368 = vrot.lane.b32.xlu0 %v363, 96
      %v369 = vpop.permute.xlu0 %368
      %370 = vrot.lane.b32.xlu0 %v367, 96
      %v371 = vpop.permute.xlu0 %370
      %372 = vrot.lane.b32.xlu0 %v364, 96
      %v373 = vpop.permute.xlu0 %372
      %vm374 = vcmask 785408
      %v375 = vsel %vm374, %v369, %v371
      %v376 = vsel %vm374, %v371, %v373
      %379 = vst [vmem:[#allocation3 + $0x30] sm:$0xf] %v375
      %380 = vst [vmem:[#allocation3 + $0x38] sm:$0xf] %v376
      %381 = vrot.lane.b32.xlu0 %v240, 95
      %v382 = vpop.permute.xlu0 %381
      %383 = vrot.lane.b32.xlu0 %v216, 95
      %v384 = vpop.permute.xlu0 %383
      %385 = vrot.lane.b32.xlu0 %v241, 95
      %v386 = vpop.permute.xlu0 %385
      %vm387 = vcmask 777216
      %v388 = vsel %vm387, %v382, %v384
      %v389 = vsel %vm387, %v384, %v386
      %392 = vst [vmem:[#allocation3 + $0x30] sm:$0xf0] %v388
      %393 = vst [vmem:[#allocation3 + $0x38] sm:$0xf0] %v389
      %394 = vrot.lane.b32.xlu0 %v264, 34
      %v395 = vpop.permute.xlu0 %394
      %v396 = vrot.slane %v395, 4
      %vm397 = vcmask 277504
      %v398 = vsel %vm397, %v396, %v395
      %v401 = vmul.f32 %v216, %v398
      %v402 = vmul.f32 %v217, %v396
      %v405 = vcombine.high %v401, %v401
      %406 = vrot.lane.b32.xlu0 %v401, 94
      %v407 = vpop.permute.xlu0 %406
      %408 = vrot.lane.b32.xlu0 %v405, 94
      %v409 = vpop.permute.xlu0 %408
      %410 = vrot.lane.b32.xlu0 %v402, 94
      %v411 = vpop.permute.xlu0 %410
      %vm412 = vcmask 769024
      %v413 = vsel %vm412, %v407, %v409
      %v414 = vsel %vm412, %v409, %v411
      %417 = vst [vmem:[#allocation3 + $0x40] sm:$0xf] %v413
      %418 = vst [vmem:[#allocation3 + $0x48] sm:$0xf] %v414
      %v419 = vld [vmem:[%s0] sm:$0xff]
      %v420 = vld [vmem:[%s0 + $0x8] sm:$0xff]
      %v421 = vld [vmem:[#allocation3] sm:$0xff]
      %v422 = vld [vmem:[#allocation3 + $0x8] sm:$0xff]
      %v423 = vld [vmem:[#allocation3 + $0x10] sm:$0xff]
      %v424 = vld [vmem:[#allocation3 + $0x18] sm:$0xff]
      %v425 = vld [vmem:[#allocation3 + $0x20] sm:$0xff]
      %v426 = vld [vmem:[#allocation3 + $0x28] sm:$0xff]
      %v427 = vld [vmem:[#allocation3 + $0x30] sm:$0xff]
      %v428 = vld [vmem:[#allocation3 + $0x38] sm:$0xff]
      %v429 = vld [vmem:[#allocation3 + $0x40] sm:$0xf]
      %v430 = vld [vmem:[#allocation3 + $0x48] sm:$0xf]
      %v431 = vld [vmem:[%s1] sm:$0xff]
      %v432 = vld [vmem:[%s1 + $0x8] sm:$0xff]
      %434 = vset.pattern.permute.xlu0 0
      %435 = vperm.xlu0 %434, %v431
      %v436 = vpop.permute.xlu0 %435
      %439 = vset.pattern.permute.xlu0 0
      %440 = vperm.xlu0 %439, %v432
      %v441 = vpop.permute.xlu0 %440
      %vm443 = vcmask 293888
      %v445 = vsel %vm443, %v419, 0
      %v448 = vsel %vm443, %v420, 0
      %vm450 = vcmask 1043456
      %v452 = vsel %vm450, %v429, 0
      %v455 = vsel %vm450, %v430, 0
      %457 = vmatprep.subr.mxu0 %v422
      %458 = vmatpush1.msra.mxu0 %v421
      %459 = vmatprep.subr.mxu0 %v424
      %460 = vmatpush1.msra.mxu0 %v423
      %461 = vmatprep.subr.mxu0 %v426
      %462 = vmatpush1.msra.mxu0 %v425
      %463 = vmatprep.subr.mxu0 %v428
      %464 = vmatpush1.msra.mxu0 %v427
      %465 = vmatprep.subr.mxu0 %v455
      %466 = vmatpush1.msra.mxu0 %v452
      %467 = vmatprep.subr.mxu0 0.0
      %468 = vmatpush1.msra.mxu0 0.0
      %469 = vmatprep.subr.mxu0 0.0
      %470 = vmatpush1.msra.mxu0 0.0
      %471 = vmatprep.subr.mxu0 0.0
      %472 = vmatpush1.msra.mxu0 0.0
      %473 = vmatprep.subr.mxu0 0.0
      %474 = vmatpush1.msra.mxu0 0.0
      %475 = vmatprep.subr.mxu0 0.0
      %476 = vmatpush1.msra.mxu0 0.0
      %477 = vmatprep.subr.mxu0 0.0
      %478 = vmatpush1.msra.mxu0 0.0
      %479 = vmatprep.subr.mxu0 0.0
      %480 = vmatpush1.msra.mxu0 0.0
      %481 = vmatprep.subr.mxu0 0.0
      %482 = vmatpush1.msra.mxu0 0.0
      %483 = vmatprep.subr.mxu0 0.0
      %484 = vmatpush1.msra.mxu0 0.0
      %485 = vmatprep.subr.mxu0 0.0
      %486 = vmatpush1.msra.mxu0 0.0
      %487 = vmatprep.subr.mxu0 0.0
      %488 = vmatpush1.msra.mxu0 0.0
      %489 = vmatprep.subr.mxu0 0.0
      %490 = vmatpush1.msra.mxu0 0.0
      %491 = vmatprep.subr.mxu0 0.0
      %492 = vmatpush1.msra.mxu0 0.0
      %493 = vmatprep.subr.mxu0 0.0
      %494 = vmatpush1.msra.mxu0 0.0
      %495 = vmatprep.subr.mxu0 0.0
      %496 = vmatpush1.msra.mxu0 0.0
      %497 = vmatprep.subr.mxu0 0.0
      %498 = vmatpush1.msra.mxu0 0.0
      %499 = vmatprep.subr.mxu0 0.0
      %500 = vmatpush1.msra.mxu0 0.0
      %501 = vmatprep.subr.mxu0 0.0
      %502 = vmatpush1.msra.mxu0 0.0
      %503 = vmatprep.subr.mxu0 0.0
      %504 = vmatpush1.msra.mxu0 0.0
      %505 = vmatprep.subr.mxu0 0.0
      %506 = vmatpush1.msra.mxu0 0.0
      %507 = vmatprep.subr.mxu0 0.0
      %508 = vmatpush1.msra.mxu0 0.0
      %509 = vmatprep.subr.mxu0 0.0
      %510 = vmatpush1.msra.mxu0 0.0
      %511 = vmatprep.subr.mxu0 0.0
      %512 = vmatpush1.msra.mxu0 0.0
      %513 = vmatprep.subr.mxu0 0.0
      %514 = vmatpush1.msra.mxu0 0.0
      %515 = vmatprep.subr.mxu0 0.0
      %516 = vmatpush1.msra.mxu0 0.0
      %517 = vmatprep.subr.mxu0 0.0
      %518 = vmatpush1.msra.mxu0 0.0
      %519 = vmatprep.subr.mxu0 0.0
      %520 = vmatpush1.msra.mxu0 0.0
      %521 = vmatprep.mubr.f32.mxu0 0.0
      %522 = vmatmul.mubr.f32.gmra.mrb[0].mxu0 %v445
      %v523 = vpop.f32.mrb[0].mxu0
      %v524 = vadd.f32 %v436, %v523
      %v525 = vpop.f32.mrb[0].mxu0
      %v526 = vadd.f32 %v436, %v525
      %527 = vmatprep.mubr.f32.mxu0 0.0
      %528 = vmatmul.mubr.f32.gmra.mrb[0].mxu0 %v448
      %v529 = vpop.f32.mrb[0].mxu0
      %v530 = vadd.f32 %v441, %v529
      %v531 = vpop.f32.mrb[0].mxu0
      %v532 = vadd.f32 %v441, %v531
      %533 = vdwg.mxu0
      %v534 = vmul.f32 %v524, 0.5
      %v535 = vmul.f32 %v526, 0.5
      %v536 = vmul.f32 %v530, 0.5
      %v537 = vmul.f32 %v532, 0.5
      %v538 = vmul.f32 %v524, 0.70710677
      %v539 = vmul.f32 %v526, 0.70710677
      %v540 = vmul.f32 %v530, 0.70710677
      %v541 = vmul.f32 %v532, 0.70710677
      %v542 = verf.f32.pop %v538
      %v543 = verf.f32.pop %v539
      %v544 = verf.f32.pop %v540
      %v545 = verf.f32.pop %v541
      %v546 = vadd.f32 %v542, 1.0
      %v547 = vadd.f32 %v543, 1.0
      %v548 = vadd.f32 %v544, 1.0
      %v549 = vadd.f32 %v545, 1.0
      %v550 = vmul.f32 %v534, %v546
      %v551 = vmul.f32 %v535, %v547
      %v552 = vmul.f32 %v536, %v548
      %v553 = vmul.f32 %v537, %v549
      %554 = vst [vmem:[%s197] sm:$0xff] %v550
      %555 = vst [vmem:[%s197 + $0x8] sm:$0xff] %v551
      %556 = vst [vmem:[%s197 + $0x10] sm:$0xff] %v552
      %557 = vst [vmem:[%s197 + $0x18] sm:$0xff] %v553
      %p558 = scmp.lt.s32.totalorder %s15, 1
      %s559 = scalar_select %p558, %s15, 1
      %s560 = smul.addr %s559, 4
      %s561 = smul.addr %s560, 8
      %s562 = scalar_lea.vmem %s4, %s561
      // Predicated region
      $region37: #{nerv_block_forward.1} parent=35 // pred_check
        %p563 = pneg %p122
      $region38: #{nerv_block_forward.1} parent=35 // pred_check_branch
        %565 = sbr.rel (%p563) target = $region40
      $region39: #{nerv_block_forward.1} parent=35 // pred_region
        _
      $region40: #{nerv_block_forward.1} parent=35 // pred_fallthru
        _
    $region36: #{nerv_block_forward.1} parent=5 // pred_fallthru
      _
    %p566 = scmp.le.s32.totalorder 2, %s10
    // Predicated region
    $region41: #{nerv_block_forward.1} parent=5 // pred_check
      %p567 = pneg %p566
    $region42: #{nerv_block_forward.1} parent=5 // pred_check_branch
      %569 = sbr.rel (%p567) target = $region44
    $region43: #{nerv_block_forward.1} parent=5 // pred_region
      %s570 = ssub.s32 %s10, 2
      // Predicated region
      $region45: #{nerv_block_forward.1} parent=43 // pred_check
        %p571 = pneg %p128
      $region46: #{nerv_block_forward.1} parent=43 // pred_check_branch
        %573 = sbr.rel (%p571) target = $region48
      $region47: #{nerv_block_forward.1} parent=43 // pred_region
        %p574 = scmp.lt.s32.totalorder %s16, 1
        %s575 = scalar_select %p574, %s16, 1
        %s576 = smul.addr %s575, 4
        %s577 = smul.addr %s576, 8
        %s578 = scalar_lea.vmem %s4, %s577
      $region48: #{nerv_block_forward.1} parent=43 // pred_fallthru
        _
    $region44: #{nerv_block_forward.1} parent=5 // pred_fallthru
      _
  $region6: #{nerv_block_forward.1} parent=0 // loop_footer
    %s14 = sadd.s32 1, %s10
  $region7: #{nerv_block_forward.1} parent=0 // loop_footer_branch
    %9 = sbr.rel target = $region3
  $region8: #{nerv_block_forward.1} parent=0 // loop_exit
    _

</llo_original>
